<compile_context>
chip_gen: v7x
topology: tpu7x:2x2x1
jax: 0.10.0
libtpu: 0.0.40
codegen_flags: <defaults>
</compile_context>

<pallas_src>
import functools
import math

import jax
import jax.numpy as jnp
from jax import lax
from jax.experimental import pallas as pl
from jax.experimental.pallas import tpu as pltpu

_LANES = 128


def _alpha_loss_kernel(log_ps_ref, target_ps_ref, vs_ref, tvs_ref,
                       out_ref, acc_ref, *,
                       inv_b, n_rows, row_tile, chunk_rows, mask_rows):
    c = pl.program_id(0)          # core / partial-sum index ("parallel")
    i = pl.program_id(1)          # streaming step on this core ("arbitrary")
    steps = pl.num_programs(1)

    @pl.when(i == 0)
    def _init():
        acc_ref[...] = jnp.zeros_like(acc_ref)

    lanes = acc_ref.shape[-1]
    block_row0 = (c * steps + i) * row_tile   # first (unclamped) global row

    def _chunk(start_row, tgt, logp):
        p = tgt.astype(jnp.float32) * logp.astype(jnp.float32)
        if mask_rows:
            rid = lax.broadcasted_iota(jnp.int32, p.shape, 0)
            p = jnp.where(block_row0 + start_row + rid < n_rows, p, 0.0)
        return p

    n_chunks = row_tile // chunk_rows
    if n_chunks == 1:
        part = _chunk(0, target_ps_ref[...], log_ps_ref[...])
    else:
        def body(j, acc):
            s = pl.multiple_of(j * chunk_rows, chunk_rows)
            return acc + _chunk(s,
                                target_ps_ref[pl.ds(s, chunk_rows), :],
                                log_ps_ref[pl.ds(s, chunk_rows), :])
        part = lax.fori_loop(0, n_chunks, body,
                             jnp.zeros((chunk_rows, lanes), jnp.float32))
    acc_ref[...] += part

    @pl.when(i == steps - 1)
    def _finalize():
        policy_sum = jnp.sum(acc_ref[...], keepdims=True)          # (1, 1)
        diff = vs_ref[...] - tvs_ref[...]                          # padded rows are 0
        value_sum = jnp.sum(diff * diff, keepdims=True)            # (1, 1)
        value_sum = jnp.where(c == 0, value_sum, 0.0)              # count once
        contrib = (value_sum - policy_sum) * jnp.float32(inv_b)    # (1, 1)
        out_ref[...] = jnp.broadcast_to(contrib, out_ref.shape)    # lane splat


def _vmem_capacity_bytes():
    try:
        return int(pltpu.get_tpu_info().vmem_capacity_bytes)
    except Exception:
        return 64 * 1024 * 1024   # conservative (v7x-sized) default


def _pick_row_tile(n_rows, lanes, itemsize, usable_bytes, requested=None):
    """Row tile: multiple of the dtype's sublane packing, sized so the
    2 policy inputs x 2 pipeline buffers fit in `usable_bytes` of VMEM."""
    mult = max(8, 32 // itemsize)          # 8 f32 / 16 bf16 / 32 int8
    if n_rows <= mult:
        return n_rows                      # single full-extent block
    padded_lanes = -(-lanes // _LANES) * _LANES
    bytes_per_row = 4 * padded_lanes * itemsize    # 2 inputs x 2 buffers
    budget_rows = usable_bytes // bytes_per_row
    if budget_rows >= 64:
        budget_rows = (budget_rows // 64) * 64     # friendly to 64-row chunks
    else:
        budget_rows = max(mult, (budget_rows // mult) * mult)
    if requested is not None:
        budget_rows = max(mult, (min(requested, budget_rows) // mult) * mult)
    return min(budget_rows, (n_rows // mult) * mult)


def alpha_loss(log_ps, vs, target_ps, target_vs, *, block_rows=None):
    B, A = log_ps.shape
    assert target_ps.shape == (B, A)
    assert vs.shape == (B, 1) and target_vs.shape == (B, 1)

    total = B * A
    itemsize = jnp.dtype(log_ps.dtype).itemsize
    cap = _vmem_capacity_bytes()
    usable = cap // 2                           # streaming-buffer budget
    vmem_limit = min(cap, usable + 16 * 1024 * 1024)

    if total % _LANES == 0:
        lanes, n_rows = _LANES, total // _LANES
        log2d = log_ps.reshape(n_rows, lanes)   # row-major reshape: zero-copy
        tgt2d = target_ps.reshape(n_rows, lanes)
    else:
        # TODO(synk): a fully lane-dense path for B*A % 128 != 0 would need an
        # in-kernel flat-index gather; the (B, A) layout below is still
        # streamed / row-tiled / masked (correct + VMEM-safe), just not full
        # lane width.
        lanes, n_rows = A, B
        log2d, tgt2d = log_ps, target_ps

    row_tile = _pick_row_tile(n_rows, lanes, itemsize, usable, block_rows)
    # Register-resident accumulation chunk (<= 8 vregs of f32 per chain group).
    chunk_rows = row_tile if row_tile <= 64 else math.gcd(row_tile, 64)

    n_blocks = -(-n_rows // row_tile)
    num_cores = 2 if n_blocks >= 2 else 1       # 2nd TensorCore on v7x (harmless elsewhere)
    steps_per_core = -(-n_blocks // num_cores)
    mask_rows = (num_cores * steps_per_core * row_tile != n_rows)
    last_block = n_blocks - 1

    if num_cores * steps_per_core > n_blocks:
        def pol_map(c, i):                      # clamp fully-overhanging steps
            return (jnp.minimum(c * steps_per_core + i, last_block), 0)
    else:
        def pol_map(c, i):
            return (c * steps_per_core + i, 0)

    # Lane-dense, fully-resident layout for the tiny value tensors.
    v_flat = vs.reshape(-1).astype(jnp.float32)
    tv_flat = target_vs.reshape(-1).astype(jnp.float32)
    vpad = (-B) % _LANES
    if vpad:
        v_flat = jnp.pad(v_flat, (0, vpad))
        tv_flat = jnp.pad(tv_flat, (0, vpad))
    vrows = (B + vpad) // _LANES
    v2d = v_flat.reshape(vrows, _LANES)
    tv2d = tv_flat.reshape(vrows, _LANES)

    kernel = functools.partial(
        _alpha_loss_kernel,
        inv_b=1.0 / B, n_rows=n_rows, row_tile=row_tile,
        chunk_rows=chunk_rows, mask_rows=mask_rows)

    cost = pl.CostEstimate(
        flops=3 * total + 3 * B,
        transcendentals=0,
        bytes_accessed=2 * total * itemsize + 8 * B + 4 * num_cores * _LANES)

    partials = pl.pallas_call(
        kernel,
        out_shape=jax.ShapeDtypeStruct((1, num_cores * _LANES), jnp.float32),
        grid_spec=pltpu.PrefetchScalarGridSpec(
            num_scalar_prefetch=0,
            grid=(num_cores, steps_per_core),
            in_specs=[
                pl.BlockSpec((row_tile, lanes), pol_map),             # log_ps
                pl.BlockSpec((row_tile, lanes), pol_map),             # target_ps
                pl.BlockSpec((vrows, _LANES), lambda c, i: (0, 0)),   # vs (resident)
                pl.BlockSpec((vrows, _LANES), lambda c, i: (0, 0)),   # target_vs
            ],
            out_specs=pl.BlockSpec((1, _LANES), lambda c, i: (0, c)),
            scratch_shapes=[pltpu.VMEM((chunk_rows, lanes), jnp.float32)],
        ),
        compiler_params=pltpu.CompilerParams(
            dimension_semantics=("parallel", "arbitrary"),
            vmem_limit_bytes=int(vmem_limit),
        ),
        cost_estimate=cost,
    )(log2d, tgt2d, v2d, tv2d)

    # One lane-splatted partial per core: pick lane 0 of each and sum.
    return jnp.sum(partials.reshape(num_cores, _LANES)[:, 0])


def alpha_loss_ref(log_ps, vs, target_ps, target_vs):
    value_loss = jnp.mean(jnp.square(vs.astype(jnp.float32)
                                     - target_vs.astype(jnp.float32)))
    policy_loss = -jnp.mean(jnp.sum(target_ps.astype(jnp.float32)
                                    * log_ps.astype(jnp.float32), axis=1))
    return value_loss + policy_loss


def _make_inputs(key, B, A, dtype=jnp.float32):
    k1, k2, k3, k4 = jax.random.split(key, 4)
    log_ps = jax.nn.log_softmax(jax.random.normal(k1, (B, A), jnp.float32), axis=1)
    target_ps = jax.nn.softmax(jax.random.normal(k2, (B, A), jnp.float32), axis=1)
    vs = jnp.tanh(jax.random.normal(k3, (B, 1), jnp.float32))
    target_vs = jnp.tanh(jax.random.normal(k4, (B, 1), jnp.float32))
    return log_ps.astype(dtype), vs, target_ps.astype(dtype), target_vs


if __name__ == "__main__":
    key = jax.random.PRNGKey(0)

    # (B, A, dtype, block_rows override) -- small shapes that exercise the
    # lane-dense aligned path, the misaligned path, in-kernel row masking,
    # the 2-partial-sum ("both TensorCores") grid, the clamped overhanging
    # step and the inner accumulation loop.
    cases = [
        (16, 32, jnp.float32, None),    # aligned, single block (primary case)
        (64, 64, jnp.float32, 8),       # aligned, multi-block, 2 partial sums
        (100, 33, jnp.float32, 80),     # misaligned, masked tail, inner loop
        (100, 33, jnp.float32, 16),     # misaligned, clamped overhanging step
        (16, 64, jnp.bfloat16, None),   # bf16 policy inputs (f32 accumulate)
    ]

    for idx, (B, A, dt, br) in enumerate(cases):
        log_ps, vs, target_ps, target_vs = _make_inputs(
            jax.random.fold_in(key, idx), B, A, dt)
        out = alpha_loss(log_ps, vs, target_ps, target_vs, block_rows=br)
        out = jax.block_until_ready(out)
        ref = alpha_loss_ref(log_ps, vs, target_ps, target_vs)
        assert jnp.allclose(out, ref, rtol=1e-5, atol=1e-5), (B, A, dt, out, ref)

    print("KERNEL_OK")
</pallas_src>

<mosaic_0001>
module attributes {stable_mosaic.version = 11 : i64} {
  func.func @_alpha_loss_kernel(%arg0: i32, %arg1: i32, %arg2: memref<4x128xf32, #tpu.memory_space<vmem>>, %arg3: memref<4x128xf32, #tpu.memory_space<vmem>>, %arg4: memref<1x128xf32, #tpu.memory_space<vmem>>, %arg5: memref<1x128xf32, #tpu.memory_space<vmem>>, %arg6: memref<1x128xf32, #tpu.memory_space<vmem>>, %arg7: memref<4x128xf32, #tpu.memory_space<vmem>>) attributes {dimension_semantics = [#tpu.dimension_semantics<parallel>, #tpu.dimension_semantics<arbitrary>], iteration_bounds = array<i64: 1, 1>, scalar_prefetch = 0 : i64, scratch_operands = 1 : i64, tpu.core_type = #tpu.core_type<tc>, window_params = [{transform_indices = @transform_0, window_bounds = array<i64: 4, 128>}, {transform_indices = @transform_1, window_bounds = array<i64: 4, 128>}, {pipeline_mode = #tpu.pipeline_mode<synchronous>, transform_indices = @transform_2, window_bounds = array<i64: 1, 128>}, {pipeline_mode = #tpu.pipeline_mode<synchronous>, transform_indices = @transform_3, window_bounds = array<i64: 1, 128>}, {transform_indices = @transform_4, window_bounds = array<i64: 1, 128>}]} {
    %c0_i32 = arith.constant 0 : i32
    %0 = arith.cmpi eq, %arg1, %c0_i32 : i32
    %1 = arith.extui %0 : i1 to i32
    %c0_i32_0 = arith.constant 0 : i32
    %2 = arith.cmpi ne, %1, %c0_i32_0 : i32
    scf.if %2 {
      %cst = arith.constant 0.000000e+00 : f32
      %12 = vector.broadcast %cst : f32 to vector<4x128xf32>
      %c0_10 = arith.constant 0 : index
      %c0_11 = arith.constant 0 : index
      %13 = vector.load %arg7[%c0_10, %c0_11] : memref<4x128xf32, #tpu.memory_space<vmem>>, vector<4x128xf32>
      tpu.vector_store %arg7[%c0_10, %c0_11], %12 {strides = array<i32>} : memref<4x128xf32, #tpu.memory_space<vmem>>, vector<4x128xf32>,
    } else {
    }
    %c0 = arith.constant 0 : index
    %c0_1 = arith.constant 0 : index
    %3 = vector.load %arg3[%c0, %c0_1] : memref<4x128xf32, #tpu.memory_space<vmem>>, vector<4x128xf32>
    %c0_2 = arith.constant 0 : index
    %c0_3 = arith.constant 0 : index
    %4 = vector.load %arg2[%c0_2, %c0_3] : memref<4x128xf32, #tpu.memory_space<vmem>>, vector<4x128xf32>
    %5 = arith.mulf %3, %4 : vector<4x128xf32>
    %c0_4 = arith.constant 0 : index
    %c0_5 = arith.constant 0 : index
    %6 = vector.load %arg7[%c0_4, %c0_5] : memref<4x128xf32, #tpu.memory_space<vmem>>, vector<4x128xf32>
    %7 = arith.addf %6, %5 : vector<4x128xf32>
    %c0_6 = arith.constant 0 : index
    %c0_7 = arith.constant 0 : index
    %8 = vector.load %arg7[%c0_6, %c0_7] : memref<4x128xf32, #tpu.memory_space<vmem>>, vector<4x128xf32>
    tpu.vector_store %arg7[%c0_6, %c0_7], %7 {strides = array<i32>} : memref<4x128xf32, #tpu.memory_space<vmem>>, vector<4x128xf32>,
    %c0_i32_8 = arith.constant 0 : i32
    %9 = arith.cmpi eq, %arg1, %c0_i32_8 : i32
    %10 = arith.extui %9 : i1 to i32
    %c0_i32_9 = arith.constant 0 : i32
    %11 = arith.cmpi ne, %10, %c0_i32_9 : i32
    scf.if %11 {
      %c0_10 = arith.constant 0 : index
      %c0_11 = arith.constant 0 : index
      %12 = vector.load %arg7[%c0_10, %c0_11] : memref<4x128xf32, #tpu.memory_space<vmem>>, vector<4x128xf32>
      %13 = vector.shape_cast %12 : vector<4x128xf32> to vector<1x4x128xf32>
      %cst = arith.constant dense<0.000000e+00> : vector<1xf32>
      %14 = vector.multi_reduction <add>, %13, %cst [1, 2] : vector<1x4x128xf32> to vector<1xf32>
      %15 = vector.shape_cast %14 : vector<1xf32> to vector<1x1x1xf32>
      %16 = vector.extract %15[0, 0, 0] : f32 from vector<1x1x1xf32>
      %17 = vector.broadcast %16 : f32 to vector<1x1xf32>
      %c0_12 = arith.constant 0 : index
      %c0_13 = arith.constant 0 : index
      %18 = vector.load %arg4[%c0_12, %c0_13] : memref<1x128xf32, #tpu.memory_space<vmem>>, vector<1x128xf32>
      %c0_14 = arith.constant 0 : index
      %c0_15 = arith.constant 0 : index
      %19 = vector.load %arg5[%c0_14, %c0_15] : memref<1x128xf32, #tpu.memory_space<vmem>>, vector<1x128xf32>
      %20 = arith.subf %18, %19 : vector<1x128xf32>
      %21 = arith.mulf %20, %20 : vector<1x128xf32>
      %22 = vector.shape_cast %21 : vector<1x128xf32> to vector<1x1x128xf32>
      %cst_16 = arith.constant dense<0.000000e+00> : vector<1xf32>
      %23 = vector.multi_reduction <add>, %22, %cst_16 [1, 2] : vector<1x1x128xf32> to vector<1xf32>
      %24 = vector.shape_cast %23 : vector<1xf32> to vector<1x1x1xf32>
      %25 = vector.extract %24[0, 0, 0] : f32 from vector<1x1x1xf32>
      %26 = vector.broadcast %25 : f32 to vector<1x1xf32>
      %c0_i32_17 = arith.constant 0 : i32
      %27 = arith.cmpi eq, %arg0, %c0_i32_17 : i32
      %cst_18 = arith.constant 0.000000e+00 : f32
      %28 = vector.broadcast %cst_18 : f32 to vector<1x1xf32>
      %29 = arith.select %27, %26, %28 : vector<1x1xf32>
      %30 = arith.subf %29, %17 : vector<1x1xf32>
      %cst_19 = arith.constant 6.250000e-02 : f32
      %31 = vector.broadcast %cst_19 : f32 to vector<1x1xf32>
      %32 = arith.mulf %30, %31 : vector<1x1xf32>
      %33 = vector.shape_cast %32 : vector<1x1xf32> to vector<1x1xf32>
      %34 = vector.broadcast %33 : vector<1x1xf32> to vector<1x128xf32>
      %c0_20 = arith.constant 0 : index
      %c0_21 = arith.constant 0 : index
      %35 = vector.load %arg6[%c0_20, %c0_21] : memref<1x128xf32, #tpu.memory_space<vmem>>, vector<1x128xf32>
      tpu.vector_store %arg6[%c0_20, %c0_21], %34 {strides = array<i32>} : memref<1x128xf32, #tpu.memory_space<vmem>>, vector<1x128xf32>,
    } else {
    }
    return
  }
  func.func @transform_0(%arg0: i32, %arg1: i32) -> (i32, i32) {
    %c1_i32 = arith.constant 1 : i32
    %0 = arith.muli %arg0, %c1_i32 : i32
    %1 = arith.addi %0, %arg1 : i32
    %c0_i32 = arith.constant 0 : i32
    %c0_i32_0 = arith.constant 0 : i32
    return %1, %c0_i32 : i32, i32
  }
  func.func @transform_1(%arg0: i32, %arg1: i32) -> (i32, i32) {
    %c1_i32 = arith.constant 1 : i32
    %0 = arith.muli %arg0, %c1_i32 : i32
    %1 = arith.addi %0, %arg1 : i32
    %c0_i32 = arith.constant 0 : i32
    %c0_i32_0 = arith.constant 0 : i32
    return %1, %c0_i32 : i32, i32
  }
  func.func @transform_2(%arg0: i32, %arg1: i32) -> (i32, i32) {
    %c0_i32 = arith.constant 0 : i32
    %c0_i32_0 = arith.constant 0 : i32
    %c0_i32_1 = arith.constant 0 : i32
    return %c0_i32, %c0_i32_0 : i32, i32
  }
  func.func @transform_3(%arg0: i32, %arg1: i32) -> (i32, i32) {
    %c0_i32 = arith.constant 0 : i32
    %c0_i32_0 = arith.constant 0 : i32
    %c0_i32_1 = arith.constant 0 : i32
    return %c0_i32, %c0_i32_0 : i32, i32
  }
  func.func @transform_4(%arg0: i32, %arg1: i32) -> (i32, i32) {
    %c0_i32 = arith.constant 0 : i32
    %c0_i32_0 = arith.constant 0 : i32
    return %c0_i32, %arg0 : i32, i32
  }
}

</mosaic_0001>

<llo_original>
// kernel: tpu_custom_call.1
$region0: #{tpu_custom_call.1}
  #allocation0 [shape = 'u32[]', space=smem, size = 0x4, offset = 0x4, fixed_abs, tag = 'smem constant byte address 0x4 - core index']
  #allocation1 [shape = 'u32[144,128]{1,0:T(1,128)}', space=vmem, size = 0x12000, scoped, tag = 'internal scratch']
  #allocation2 [shape = 'f32[4,128]{1,0:T(4,128)}', space=vmem, size = 0x800, scoped, tag = 'scratch operand']
  %s0 = inlined_call_operand.hbm [shape: f32[4,128], index: 0, kind: input, shape index: {}]
  %s1 = inlined_call_operand.hbm [shape: f32[4,128], index: 1, kind: input, shape index: {}]
  %s2 = inlined_call_operand.vmem [shape: f32[1,128], index: 2, kind: input, shape index: {}]
  %s3 = inlined_call_operand.vmem [shape: f32[1,128], index: 3, kind: input, shape index: {}]
  %s4 = inlined_call_operand.hbm [shape: f32[1,128], index: 4, kind: output, shape index: {}]
  %s5 = sld [smem:[#allocation0]]
  $region42: #{tpu_custom_call.1} parent=0
    _
  %s7 = ssub.s32 1, %s5
  %s8 = scalar_select 0, %s7, %s5
  $region1: #{tpu_custom_call.1} parent=0
    #allocation3 [shape = 'u8[2048]{0}', space=vmem, size = 0x800, scoped, tag = 'input window, operand 0, single buffered']
    #allocation4 [shape = 's32[1]{0}', space=sflag, size = 0x4, scoped, tag = 'scoped memory for tpu_custom_call.1']
    #allocation5 [shape = 's32[1]{0}', space=sflag, size = 0x4, scoped, tag = 'scoped memory for tpu_custom_call.1']
    #allocation6 [shape = 'u8[2048]{0}', space=vmem, size = 0x800, scoped, tag = 'input window, operand 1, single buffered']
    #allocation7 [shape = 's32[1]{0}', space=sflag, size = 0x4, scoped, tag = 'scoped memory for tpu_custom_call.1']
    #allocation8 [shape = 'u8[512]{0}', space=vmem, size = 0x400, scoped, tag = 'output window, operand 0, single buffered']
    %9 = vsyncpa [#allocation4], 0
    %10 = vsyncpa [#allocation7], 0
    %11 = vsyncpa [#allocation5], 0
    // Predicated region
    $region2: #{tpu_custom_call.1} parent=1 // pred_check
      _
    $region3: #{tpu_custom_call.1} parent=1 // pred_check_branch
      %13 = sbr.rel (0) target = $region5
    $region4: #{tpu_custom_call.1} parent=1 // pred_region
      %s14 = sadd.s32 0, 0
      %s16 = ssub.s32 64, 64
      %17 = vsyncadd [#allocation4], %s16
      %s18 = smul.addr %s14, 64
      %s19 = scalar_lea.hbm %s0, %s18
      %s21 = sshll.u32 [#allocation3], 4
      %s22 = int_to_ptr.vmem [resolvable:$true] %s21
      %24 = dma.hbm_to_vmem [thread:$0]  %s19, 64, %s22, [#allocation4]
    $region5: #{tpu_custom_call.1} parent=1 // pred_fallthru
      _
    // Predicated region
    $region6: #{tpu_custom_call.1} parent=1 // pred_check
      _
    $region7: #{tpu_custom_call.1} parent=1 // pred_check_branch
      %26 = sbr.rel (0) target = $region9
    $region8: #{tpu_custom_call.1} parent=1 // pred_region
      %s27 = sadd.s32 0, 0
      %s29 = ssub.s32 64, 64
      %30 = vsyncadd [#allocation7], %s29
      %s31 = smul.addr %s27, 64
      %s32 = scalar_lea.hbm %s1, %s31
      %s34 = sshll.u32 [#allocation6], 4
      %s35 = int_to_ptr.vmem [resolvable:$true] %s34
      %37 = dma.hbm_to_vmem [thread:$0]  %s32, 64, %s35, [#allocation7]
    $region9: #{tpu_custom_call.1} parent=1 // pred_fallthru
      _
    // Predicated region
    $region10: #{tpu_custom_call.1} parent=1 // pred_check
      _
    $region11: #{tpu_custom_call.1} parent=1 // pred_check_branch
      %39 = sbr.rel (0) target = $region13
    $region12: #{tpu_custom_call.1} parent=1 // pred_region
      _
    $region13: #{tpu_custom_call.1} parent=1 // pred_fallthru
      _
    // Predicated region
    $region14: #{tpu_custom_call.1} parent=1 // pred_check
      _
    $region15: #{tpu_custom_call.1} parent=1 // pred_check_branch
      %41 = sbr.rel (0) target = $region17
    $region16: #{tpu_custom_call.1} parent=1 // pred_region
      _
    $region17: #{tpu_custom_call.1} parent=1 // pred_fallthru
      _
    // Predicated region
    $region18: #{tpu_custom_call.1} parent=1 // pred_check
      _
    $region19: #{tpu_custom_call.1} parent=1 // pred_check_branch
      %43 = sbr.rel (0) target = $region21
    $region20: #{tpu_custom_call.1} parent=1 // pred_region
      %44 = dma.done [#allocation4], 64
    $region21: #{tpu_custom_call.1} parent=1 // pred_fallthru
      _
    // Predicated region
    $region22: #{tpu_custom_call.1} parent=1 // pred_check
      _
    $region23: #{tpu_custom_call.1} parent=1 // pred_check_branch
      %46 = sbr.rel (0) target = $region25
    $region24: #{tpu_custom_call.1} parent=1 // pred_region
      %47 = dma.done [#allocation7], 64
    $region25: #{tpu_custom_call.1} parent=1 // pred_fallthru
      _
    %s48 = sadd.s32 0, 0
    %s49 = sadd.s32 0, 0
    %p50 = scmp.eq.s32.totalorder 0, 0
    // Predicated region
    $region26: #{tpu_custom_call.1} parent=1 // pred_check
      %p51 = pneg %p50
    $region27: #{tpu_custom_call.1} parent=1 // pred_check_branch
      %53 = sbr.rel (%p51) target = $region29
    $region28: #{tpu_custom_call.1} parent=1 // pred_region
      %54 = vst [vmem:[#allocation2] sm:$0xf] 0.0
    $region29: #{tpu_custom_call.1} parent=1 // pred_fallthru
      _
    %v55 = vld [vmem:[#allocation6] sm:$0xf]
    %v56 = vld [vmem:[#allocation3] sm:$0xf]
    %v57 = vmul.f32 %v55, %v56
    %v58 = vld [vmem:[#allocation2] sm:$0xf]
    %v59 = vadd.f32 %v58, %v57
    %60 = vst [vmem:[#allocation2] sm:$0xf] %v59
    // Predicated region
    $region30: #{tpu_custom_call.1} parent=1 // pred_check
      %p61 = pneg %p50
    $region31: #{tpu_custom_call.1} parent=1 // pred_check_branch
      %63 = sbr.rel (%p61) target = $region33
    $region32: #{tpu_custom_call.1} parent=1 // pred_region
      %v64 = vld [vmem:[#allocation2] sm:$0xf]
      %vm65 = vcmask 1043456
      %v66 = vsel %vm65, %v64, 0.0
      %67 = vadd.xlane.f32.xlu0 %v66
      %v68 = vpop.xlane.xlu0 %67
      %v69 = vrot.slane %v68, 4
      %v70 = vadd.f32 %v68, %v69
      %v71 = vrot.slane %v70, 2
      %v72 = vadd.f32 %v70, %v71
      %v73 = vrot.slane %v72, 1
      %v74 = vadd.f32 %v72, %v73
      %s75 = vtos %v74
      %v76 = vstv %s75
      %v77 = vld [vmem:[%s2] sm:$0x1]
      %v78 = vld [vmem:[%s3] sm:$0x1]
      %v79 = vsub.f32 %v77, %v78
      %v80 = vmul.f32 %v79, %v79
      %vm81 = vcmask 1040384
      %v82 = vsel %vm81, %v80, 0.0
      %83 = vadd.xlane.f32.xlu0 %v82
      %v84 = vpop.xlane.xlu0 %83
      %v85 = vrot.slane %v84, 4
      %v86 = vadd.f32 %v84, %v85
      %v87 = vrot.slane %v86, 2
      %v88 = vadd.f32 %v86, %v87
      %v89 = vrot.slane %v88, 1
      %v90 = vadd.f32 %v88, %v89
      %s91 = vtos %v90
      %v92 = vstv %s91
      %p93 = scmp.eq.s32.totalorder 0, 0
      %s94 = scalar_select %p93, 1, 0
      %v95 = vstv %s94
      %vm96 = vcmp.eq.s32.totalorder %v95, 1
      %v97 = vsel %vm96, %v92, 0.0
      %v98 = vsub.f32 %v97, %v76
      %v99 = vmul.f32 %v98, 0.0625
      %100 = vst [vmem:[#allocation8] sm:$0x1] %v99
    $region33: #{tpu_custom_call.1} parent=1 // pred_fallthru
      _
    // Predicated region
    $region34: #{tpu_custom_call.1} parent=1 // pred_check
      _
    $region35: #{tpu_custom_call.1} parent=1 // pred_check_branch
      %102 = sbr.rel (0) target = $region37
    $region36: #{tpu_custom_call.1} parent=1 // pred_region
      %s104 = ssub.s32 16, 16
      %105 = vsyncadd [#allocation5], %s104
      %s107 = sshll.u32 [#allocation8], 4
      %s108 = int_to_ptr.vmem [resolvable:$true] %s107
      %110 = dma.vmem_to_hbm [thread:$0]  %s108, 16, %s4, [#allocation5]
    $region37: #{tpu_custom_call.1} parent=1 // pred_fallthru
      _
    // Predicated region
    $region38: #{tpu_custom_call.1} parent=1 // pred_check
      _
    $region39: #{tpu_custom_call.1} parent=1 // pred_check_branch
      %112 = sbr.rel (0) target = $region41
    $region40: #{tpu_custom_call.1} parent=1 // pred_region
      %113 = dma.done [#allocation5], 16
    $region41: #{tpu_custom_call.1} parent=1 // pred_fallthru
      _
    %114 = vsyncpa [#allocation4], 1
    %115 = vsyncpa [#allocation7], 1
    %116 = vsyncpa [#allocation5], 1

</llo_original>
